<compile_context>
chip_gen: v7x
topology: tpu7x:2x2x1
jax: 0.10.0
libtpu: 0.0.40
codegen_flags: <defaults>
</compile_context>

<pallas_src>
import jax
import jax.numpy as jnp
from jax.experimental import pallas as pl
from jax.experimental.pallas import tpu as pltpu


_DEFAULT_BLOCK_BATCH = 32768   # rows of x per grid step (~2 MiB bf16 x tile)
_MAX_BLOCK_ROWS_2B = 65536     # VMEM-budget cap (v7x-safe) for 2-byte compute dtype
_MAX_BLOCK_ROWS_4B = 32768     # VMEM-budget cap for 4-byte compute dtype


# --------------------------------------------------------------------------- #
# Kernel
# --------------------------------------------------------------------------- #
def _mlp_kernel(x_ref, w1_ref, b1_ref, w2_ref, b2_ref, o_ref):
    # Layer 1: Linear (+ folded BatchNorm) on the MXU, f32 accumulation.
    h = jnp.dot(x_ref[...], w1_ref[...], preferred_element_type=jnp.float32)
    # Bias (+ folded BN shift) and ReLU in f32 on the VPU (v5e VPU has no bf16).
    h = jnp.maximum(h + b1_ref[...], 0.0)
    # Dropout: identity in eval mode.
    # TODO(synk): training-mode dropout / batch-statistics BatchNorm not implemented.
    # Layer 2: Linear on the MXU (tiny; MXU is far from saturated, kernel is mem-bound).
    out = jnp.dot(h.astype(w2_ref.dtype), w2_ref[...],
                  preferred_element_type=jnp.float32)
    # TODO(synk): lane-dense output repack ((bn_s, P*d_out) -> (bn_s//16, 128)) needs a
    # cross-lane reshape whose Mosaic lowering is not guaranteed; output is only ~1/9
    # of the HBM traffic, so it is stored 8-lane-wide here.
    o_ref[...] = (out + b2_ref[...]).astype(o_ref.dtype)


# --------------------------------------------------------------------------- #
# Tiling helpers
# --------------------------------------------------------------------------- #
def _num_tensorcores_default():
    """Best-effort detection of chips whose 'parallel' grid axes shard over 2 TCs."""
    try:
        kind = getattr(jax.devices()[0], "device_kind", "").lower()
    except Exception:
        return 1
    if any(tag in kind for tag in ("v7", "7x", "v4", "v5p")):
        return 2
    return 1   # v5e / v6e: single TensorCore per chip


def _tiling(n_rows, d_in, block_batch, num_tc, itemsize):
    """Shared tiling math used by both pack_inputs() and the forward pass."""
    P = 128 // d_in if (d_in > 0 and 128 % d_in == 0) else 1   # rows per 128-lane super-row
    align = 8 * P                                              # sublane(8) x pack factor
    # Hard cap: x tile (x3 buffers) + f32 intermediates stay ~<=24 MiB of VMEM,
    # safe on v7x's 64 MiB physical VMEM (and trivially on v5e/v6e's 128 MiB).
    max_rows = _MAX_BLOCK_ROWS_2B if itemsize <= 2 else _MAX_BLOCK_ROWS_4B

    n_round = pl.cdiv(max(n_rows, 1), align) * align
    rb = min(block_batch, max_rows, n_round)
    rb = max(align, (rb // align) * align)

    if num_tc >= 2 and n_round >= 2 * align:
        # 2-TC megacore (e.g. v7x): keep >= 2 grid steps so both cores get work.
        # (Gated on num_tc: on single-TC v5e/v6e this cap only hurt.)
        rb = min(rb, max(align, pl.cdiv(n_round, 2 * align) * align))

    steps = pl.cdiv(n_round, rb)
    if num_tc >= 2:
        # Balanced split across TensorCores: round the step count up to a
        # multiple of num_tc and shrink the tile to match (no wasted full tile).
        steps = pl.cdiv(steps, num_tc) * num_tc
        rb = max(align, pl.cdiv(pl.cdiv(n_round, steps), align) * align)

    n_pad = steps * rb
    return P, align, rb, n_pad, steps


# --------------------------------------------------------------------------- #
# Public API
# --------------------------------------------------------------------------- #
def pack_inputs(x, *, block_batch=_DEFAULT_BLOCK_BATCH,
                compute_dtype=jnp.bfloat16, num_tensorcores=None):
    """Pad + lane-pack + cast x: (N, d_in) -> (N_pad // P, P * d_in) in compute_dtype.

    Preferred API boundary for the fused forward (perf-review item #1): jit /
    compose this with the producer of `x` so the repack fuses into the producer's
    output write and no standalone HBM pass over x exists.
    """
    n, d_in = x.shape
    ntc = num_tensorcores if num_tensorcores is not None else _num_tensorcores_default()
    itemsize = jnp.finfo(compute_dtype).bits // 8
    P, _, _, n_pad, _ = _tiling(n, d_in, block_batch, ntc, itemsize)
    if n_pad != n:
        x = jnp.pad(x, ((0, n_pad - n), (0, 0)))
    return x.reshape(n_pad // P, P * d_in).astype(compute_dtype)


def two_layer_mlp_forward(x, params, *, valid_rows=None,
                          block_batch=_DEFAULT_BLOCK_BATCH,
                          compute_dtype=jnp.bfloat16,
                          out_dtype=jnp.float32,
                          num_tensorcores=None):
    """Fused eval-mode forward of TwoLayerMLP.

    x: either raw (N, d_in) (any float dtype; packed internally as a convenience),
       or the pre-packed (N_pad//P, P*d_in) array from pack_inputs() (preferred:
       the repack then fuses with x's producer and this function does no extra
       pass over x).
    valid_rows: number of valid (un-padded) rows to return; defaults to N for the
       raw path and to all rows for the packed path.
    """
    w1, b1 = params["w1"], params["b1"]
    gamma, beta = params["gamma"], params["beta"]
    run_mean, run_var = params["running_mean"], params["running_var"]
    w2, b2 = params["w2"], params["b2"]
    hidden, d_in = w1.shape
    d_out = w2.shape[0]
    eps = 1e-5

    if x.ndim != 2:
        raise ValueError(f"expected 2-D input, got shape {x.shape}")

    ntc = num_tensorcores if num_tensorcores is not None else _num_tensorcores_default()
    itemsize = jnp.finfo(compute_dtype).bits // 8
    P_probe = 128 // d_in if (d_in > 0 and 128 % d_in == 0) else 1
    is_packed = (P_probe > 1 and x.shape[1] == P_probe * d_in)

    if is_packed:
        n_rows = x.shape[0] * P_probe
        P, _, rb, n_pad, steps = _tiling(n_rows, d_in, block_batch, ntc, itemsize)
        if n_pad != n_rows:
            raise ValueError(
                "pre-packed x must come from pack_inputs() with the same "
                "block_batch / compute_dtype / num_tensorcores settings")
        x_packed = x.astype(compute_dtype)        # no-op when already compute_dtype
        n_valid = n_rows if valid_rows is None else valid_rows
    else:
        if x.shape[1] != d_in:
            raise ValueError(f"expected last dim {d_in} or {P_probe * d_in}, got {x.shape[1]}")
        n_valid = x.shape[0] if valid_rows is None else valid_rows
        # Convenience path: pack here.  For peak performance call pack_inputs()
        # fused with x's producer instead (avoids a standalone HBM pass over x).
        x_packed = pack_inputs(x, block_batch=block_batch,
                               compute_dtype=compute_dtype, num_tensorcores=ntc)
        P, _, rb, n_pad, steps = _tiling(x.shape[0], d_in, block_batch, ntc, itemsize)

    bn_s = rb // P                 # super-rows per grid step (multiple of 8)
    n_super = n_pad // P
    grid = (steps,)

    # ---- Fold BatchNorm (eval mode) into W1 / a single bias (weights are ~KiB). ----
    scale = gamma / jnp.sqrt(run_var + eps)                      # (H,)
    w1_eff = w1.T * scale[None, :]                               # (d_in, H)
    b1_eff = (b1 - run_mean) * scale + beta                      # (H,)
    w2_eff = w2.T                                                # (H, d_out)

    # Block-diagonal weights so P packed rows are processed per 128-lane super-row.
    eye = jnp.eye(P, dtype=jnp.float32)
    w1_blk = jnp.kron(eye, w1_eff).astype(compute_dtype)         # (P*d_in, P*H)
    w2_blk = jnp.kron(eye, w2_eff).astype(compute_dtype)         # (P*H, P*d_out)
    b1_blk = jnp.tile(b1_eff, P)[None, :].astype(jnp.float32)    # (1, P*H)
    b2_blk = jnp.tile(b2, P)[None, :].astype(jnp.float32)        # (1, P*d_out)

    def call_kernel(x_spec_extra):
        x_spec = pl.BlockSpec((bn_s, P * d_in), lambda i: (i, 0), **x_spec_extra)
        return pl.pallas_call(
            _mlp_kernel,
            out_shape=jax.ShapeDtypeStruct((n_super, P * d_out), out_dtype),
            grid=grid,
            in_specs=[
                x_spec,
                pl.BlockSpec((P * d_in, P * hidden), lambda i: (0, 0)),   # W1' blk-diag
                pl.BlockSpec((1, P * hidden), lambda i: (0, 0)),          # fused bias 1
                pl.BlockSpec((P * hidden, P * d_out), lambda i: (0, 0)),  # W2' blk-diag
                pl.BlockSpec((1, P * d_out), lambda i: (0, 0)),           # bias 2
            ],
            out_specs=pl.BlockSpec((bn_s, P * d_out), lambda i: (i, 0)),
            compiler_params=pltpu.CompilerParams(
                dimension_semantics=("parallel",),
                # Explicit scoped-VMEM budget with headroom: well above our
                # ~10-24 MiB usage, well below v7x's 64 MiB physical VMEM.
                vmem_limit_bytes=40 * 1024 * 1024,
            ),
        )(x_packed, w1_blk, b1_blk, w2_blk, b2_blk)

    # Minor perf item: 3-deep buffering on the x stream, with safe fallback.
    buffered = getattr(pl, "Buffered", None)
    out_packed = None
    if buffered is not None:
        try:
            out_packed = call_kernel({"pipeline_mode": buffered(3)})
        except Exception:
            out_packed = None
    if out_packed is None:
        out_packed = call_kernel({})

    # Row-major unpack of the lane-packed result (tiny: d_out columns).
    out = out_packed.reshape(n_pad, d_out)
    return out[:n_valid]


# --------------------------------------------------------------------------- #
# Parameter init + pure-JAX reference (for validation)
# --------------------------------------------------------------------------- #
def init_params(key, input_dim=32, hidden_dim=16, output_dim=2):
    """Matches the PyTorch module's _initialize_weights:
    kaiming_normal_(nonlinearity='relu') -> std = sqrt(2/fan_in); biases = 0;
    BatchNorm1d defaults: gamma=1, beta=0, running_mean=0, running_var=1."""
    k1, k2 = jax.random.split(key)
    std1 = (2.0 / input_dim) ** 0.5
    std2 = (2.0 / hidden_dim) ** 0.5
    return {
        "w1": std1 * jax.random.normal(k1, (hidden_dim, input_dim), jnp.float32),
        "b1": jnp.zeros((hidden_dim,), jnp.float32),
        "gamma": jnp.ones((hidden_dim,), jnp.float32),
        "beta": jnp.zeros((hidden_dim,), jnp.float32),
        "running_mean": jnp.zeros((hidden_dim,), jnp.float32),
        "running_var": jnp.ones((hidden_dim,), jnp.float32),
        "w2": std2 * jax.random.normal(k2, (output_dim, hidden_dim), jnp.float32),
        "b2": jnp.zeros((output_dim,), jnp.float32),
    }


def _reference_forward(x, params):
    """Pure-JAX f32 reference of the eval-mode forward pass."""
    eps = 1e-5
    h = x @ params["w1"].T + params["b1"]
    h = (h - params["running_mean"]) / jnp.sqrt(params["running_var"] + eps)
    h = h * params["gamma"] + params["beta"]
    h = jnp.maximum(h, 0.0)
    return h @ params["w2"].T + params["b2"]


# --------------------------------------------------------------------------- #
# Demo / self-test
# --------------------------------------------------------------------------- #
if __name__ == "__main__":
    key = jax.random.PRNGKey(0)
    k_param, k_x = jax.random.split(key)

    input_dim, hidden_dim, output_dim = 32, 16, 2
    batch = 100   # non-multiple of the row tile -> exercises padding / packing

    params = init_params(k_param, input_dim, hidden_dim, output_dim)
    x = jax.random.normal(k_x, (batch, input_dim), jnp.float32)
    ref = _reference_forward(x, params)

    # 1) Exact-precision path (f32 everywhere): validates BN fold + lane packing.
    out_f32 = jax.block_until_ready(
        two_layer_mlp_forward(x, params, compute_dtype=jnp.float32))
    assert out_f32.shape == (batch, output_dim), out_f32.shape
    assert jnp.allclose(out_f32, ref, atol=1e-4, rtol=1e-4), "f32 mismatch vs reference"

    # 2) Performance path (bf16 reads, f32 accumulation), raw-x convenience API.
    out_bf16 = jax.block_until_ready(two_layer_mlp_forward(x, params))
    assert out_bf16.shape == (batch, output_dim), out_bf16.shape
    assert jnp.allclose(out_bf16, ref, atol=1e-1, rtol=1e-1), "bf16 mismatch vs reference"

    # 3) Pre-packed API boundary (review item #1): pack_inputs jitted together
    #    with x's producer so the repack fuses into the producer's output write.
    fused_producer_and_pack = jax.jit(
        lambda k: pack_inputs(jax.random.normal(k, (batch, input_dim), jnp.float32)))
    x_packed = fused_producer_and_pack(k_x)
    out_packed_path = jax.block_until_ready(
        two_layer_mlp_forward(x_packed, params, valid_rows=batch))
    assert out_packed_path.shape == (batch, output_dim), out_packed_path.shape
    assert jnp.allclose(out_packed_path, out_bf16, atol=1e-6, rtol=1e-6), \
        "pre-packed path mismatch vs raw path"

    print("KERNEL_OK")
</pallas_src>

<mosaic_0001>
module attributes {stable_mosaic.version = 11 : i64} {
  func.func @_mlp_kernel(%arg0: i32, %arg1: memref<32x128xf32, #tpu.memory_space<vmem>>, %arg2: memref<128x64xf32, #tpu.memory_space<vmem>>, %arg3: memref<1x64xf32, #tpu.memory_space<vmem>>, %arg4: memref<64x8xf32, #tpu.memory_space<vmem>>, %arg5: memref<1x8xf32, #tpu.memory_space<vmem>>, %arg6: memref<32x8xf32, #tpu.memory_space<vmem>>) attributes {dimension_semantics = [#tpu.dimension_semantics<parallel>], iteration_bounds = array<i64: 1>, scalar_prefetch = 0 : i64, scratch_operands = 0 : i64, tpu.core_type = #tpu.core_type<tc>, window_params = [{transform_indices = @transform_0, window_bounds = array<i64: 32, 128>}, {pipeline_mode = #tpu.pipeline_mode<synchronous>, transform_indices = @transform_1, window_bounds = array<i64: 128, 64>}, {pipeline_mode = #tpu.pipeline_mode<synchronous>, transform_indices = @transform_2, window_bounds = array<i64: 1, 64>}, {pipeline_mode = #tpu.pipeline_mode<synchronous>, transform_indices = @transform_3, window_bounds = array<i64: 64, 8>}, {pipeline_mode = #tpu.pipeline_mode<synchronous>, transform_indices = @transform_4, window_bounds = array<i64: 1, 8>}, {transform_indices = @transform_5, window_bounds = array<i64: 32, 8>}]} {
    %c0 = arith.constant 0 : index
    %c0_0 = arith.constant 0 : index
    %0 = vector.load %arg1[%c0, %c0_0] : memref<32x128xf32, #tpu.memory_space<vmem>>, vector<32x128xf32>
    %c0_1 = arith.constant 0 : index
    %c0_2 = arith.constant 0 : index
    %1 = vector.load %arg2[%c0_1, %c0_2] : memref<128x64xf32, #tpu.memory_space<vmem>>, vector<128x64xf32>
    %cst = arith.constant dense<0.000000e+00> : vector<32x64xf32>
    %2 = tpu.matmul %0, %1, %cst {dimension_numbers = #tpu.dot_dimension_numbers<[1], [0], [0], [1], [0, 0, 1, 1], [], []>} : vector<32x128xf32>, vector<128x64xf32>, vector<32x64xf32> -> vector<32x64xf32>
    %c0_3 = arith.constant 0 : index
    %c0_4 = arith.constant 0 : index
    %3 = vector.load %arg3[%c0_3, %c0_4] : memref<1x64xf32, #tpu.memory_space<vmem>>, vector<1x64xf32>
    %4 = vector.broadcast %3 : vector<1x64xf32> to vector<32x64xf32>
    %5 = arith.addf %2, %4 : vector<32x64xf32>
    %cst_5 = arith.constant 0.000000e+00 : f32
    %6 = vector.broadcast %cst_5 : f32 to vector<32x64xf32>
    %7 = arith.maximumf %5, %6 : vector<32x64xf32>
    %c0_6 = arith.constant 0 : index
    %c0_7 = arith.constant 0 : index
    %8 = vector.load %arg4[%c0_6, %c0_7] : memref<64x8xf32, #tpu.memory_space<vmem>>, vector<64x8xf32>
    %cst_8 = arith.constant dense<0.000000e+00> : vector<32x8xf32>
    %9 = tpu.matmul %7, %8, %cst_8 {dimension_numbers = #tpu.dot_dimension_numbers<[1], [0], [0], [1], [0, 0, 1, 1], [], []>} : vector<32x64xf32>, vector<64x8xf32>, vector<32x8xf32> -> vector<32x8xf32>
    %c0_9 = arith.constant 0 : index
    %c0_10 = arith.constant 0 : index
    %10 = vector.load %arg5[%c0_9, %c0_10] : memref<1x8xf32, #tpu.memory_space<vmem>>, vector<1x8xf32>
    %11 = vector.broadcast %10 : vector<1x8xf32> to vector<32x8xf32>
    %12 = arith.addf %9, %11 : vector<32x8xf32>
    %c0_11 = arith.constant 0 : index
    %c0_12 = arith.constant 0 : index
    %13 = vector.load %arg6[%c0_11, %c0_12] : memref<32x8xf32, #tpu.memory_space<vmem>>, vector<32x8xf32>
    tpu.vector_store %arg6[%c0_11, %c0_12], %12 {strides = array<i32>} : memref<32x8xf32, #tpu.memory_space<vmem>>, vector<32x8xf32>,
    return
  }
  func.func @transform_0(%arg0: i32) -> (i32, i32) {
    %c0_i32 = arith.constant 0 : i32
    %c0_i32_0 = arith.constant 0 : i32
    return %arg0, %c0_i32 : i32, i32
  }
  func.func @transform_1(%arg0: i32) -> (i32, i32) {
    %c0_i32 = arith.constant 0 : i32
    %c0_i32_0 = arith.constant 0 : i32
    %c0_i32_1 = arith.constant 0 : i32
    return %c0_i32, %c0_i32_0 : i32, i32
  }
  func.func @transform_2(%arg0: i32) -> (i32, i32) {
    %c0_i32 = arith.constant 0 : i32
    %c0_i32_0 = arith.constant 0 : i32
    %c0_i32_1 = arith.constant 0 : i32
    return %c0_i32, %c0_i32_0 : i32, i32
  }
  func.func @transform_3(%arg0: i32) -> (i32, i32) {
    %c0_i32 = arith.constant 0 : i32
    %c0_i32_0 = arith.constant 0 : i32
    %c0_i32_1 = arith.constant 0 : i32
    return %c0_i32, %c0_i32_0 : i32, i32
  }
  func.func @transform_4(%arg0: i32) -> (i32, i32) {
    %c0_i32 = arith.constant 0 : i32
    %c0_i32_0 = arith.constant 0 : i32
    %c0_i32_1 = arith.constant 0 : i32
    return %c0_i32, %c0_i32_0 : i32, i32
  }
  func.func @transform_5(%arg0: i32) -> (i32, i32) {
    %c0_i32 = arith.constant 0 : i32
    %c0_i32_0 = arith.constant 0 : i32
    return %arg0, %c0_i32 : i32, i32
  }
}

</mosaic_0001>

<llo_original>
// kernel: tpu_custom_call.1
$region0: #{tpu_custom_call.1}
  #allocation0 [shape = 'u32[]', space=smem, size = 0x4, offset = 0x4, fixed_abs, tag = 'smem constant byte address 0x4 - core index']
  #allocation1 [shape = 'u32[144,128]{1,0:T(1,128)}', space=vmem, size = 0x12000, scoped, tag = 'internal scratch']
  %s0 = inlined_call_operand.vmem [shape: f32[32,128], index: 0, kind: input, shape index: {}]
  %s1 = inlined_call_operand.vmem [shape: f32[128,64], index: 1, kind: input, shape index: {}]
  %s2 = inlined_call_operand.vmem [shape: f32[1,64], index: 2, kind: input, shape index: {}]
  %s3 = inlined_call_operand.vmem [shape: f32[64,8], index: 3, kind: input, shape index: {}]
  %s4 = inlined_call_operand.vmem [shape: f32[1,8], index: 4, kind: input, shape index: {}]
  %s5 = inlined_call_operand.vmem [shape: f32[32,8], index: 5, kind: output, shape index: {}]
  %s6 = sld [smem:[#allocation0]]
  $region30: #{tpu_custom_call.1} parent=0
    _
  %s8 = ssub.s32 1, %s6
  %s9 = scalar_select 0, %s8, %s6
  // Predicated region
  $region2: #{tpu_custom_call.1} parent=0 // pred_check
    _
  $region3: #{tpu_custom_call.1} parent=0 // pred_check_branch
    %11 = sbr.rel (0) target = $region5
  $region4: #{tpu_custom_call.1} parent=0 // pred_region
    _
  $region5: #{tpu_custom_call.1} parent=0 // pred_fallthru
    _
  // Predicated region
  $region6: #{tpu_custom_call.1} parent=0 // pred_check
    _
  $region7: #{tpu_custom_call.1} parent=0 // pred_check_branch
    %13 = sbr.rel (0) target = $region9
  $region8: #{tpu_custom_call.1} parent=0 // pred_region
    _
  $region9: #{tpu_custom_call.1} parent=0 // pred_fallthru
    _
  // Predicated region
  $region10: #{tpu_custom_call.1} parent=0 // pred_check
    _
  $region11: #{tpu_custom_call.1} parent=0 // pred_check_branch
    %15 = sbr.rel (0) target = $region13
  $region12: #{tpu_custom_call.1} parent=0 // pred_region
    _
  $region13: #{tpu_custom_call.1} parent=0 // pred_fallthru
    _
  // Predicated region
  $region14: #{tpu_custom_call.1} parent=0 // pred_check
    _
  $region15: #{tpu_custom_call.1} parent=0 // pred_check_branch
    %17 = sbr.rel (0) target = $region17
  $region16: #{tpu_custom_call.1} parent=0 // pred_region
    _
  $region17: #{tpu_custom_call.1} parent=0 // pred_fallthru
    _
  // Predicated region
  $region18: #{tpu_custom_call.1} parent=0 // pred_check
    _
  $region19: #{tpu_custom_call.1} parent=0 // pred_check_branch
    %19 = sbr.rel (0) target = $region21
  $region20: #{tpu_custom_call.1} parent=0 // pred_region
    _
  $region21: #{tpu_custom_call.1} parent=0 // pred_fallthru
    _
  %v20 = vld [vmem:[%s0] sm:$0xff]
  %v21 = vld [vmem:[%s0 + $0x8] sm:$0xff]
  %v22 = vld [vmem:[%s0 + $0x10] sm:$0xff]
  %v23 = vld [vmem:[%s0 + $0x18] sm:$0xff]
  %v24 = vld [vmem:[%s1] sm:$0xff]
  %v25 = vld [vmem:[%s1 + $0x8] sm:$0xff]
  %v26 = vld [vmem:[%s1 + $0x10] sm:$0xff]
  %v27 = vld [vmem:[%s1 + $0x18] sm:$0xff]
  %v28 = vld [vmem:[%s1 + $0x20] sm:$0xff]
  %v29 = vld [vmem:[%s1 + $0x28] sm:$0xff]
  %v30 = vld [vmem:[%s1 + $0x30] sm:$0xff]
  %v31 = vld [vmem:[%s1 + $0x38] sm:$0xff]
  %v32 = vld [vmem:[%s1 + $0x40] sm:$0xff]
  %v33 = vld [vmem:[%s1 + $0x48] sm:$0xff]
  %v34 = vld [vmem:[%s1 + $0x50] sm:$0xff]
  %v35 = vld [vmem:[%s1 + $0x58] sm:$0xff]
  %v36 = vld [vmem:[%s1 + $0x60] sm:$0xff]
  %v37 = vld [vmem:[%s1 + $0x68] sm:$0xff]
  %v38 = vld [vmem:[%s1 + $0x70] sm:$0xff]
  %v39 = vld [vmem:[%s1 + $0x78] sm:$0xff]
  %v40 = vld [vmem:[%s2] sm:$0x1]
  %v42 = vlaneseq
  %v43 = vshrl.u32 %v42, 7
  %v44 = vsub.s32 0, %v43
  %v45 = vrot.slane %v40, %v44
  %47 = vmatprep.subr.mxu0 0.0
  %48 = vmatpush1.msra.mxu0 %v24
  %49 = vmatprep.subr.mxu0 0.0
  %50 = vmatpush1.msra.mxu0 %v25
  %51 = vmatprep.subr.mxu0 0.0
  %52 = vmatpush1.msra.mxu0 %v26
  %53 = vmatprep.subr.mxu0 0.0
  %54 = vmatpush1.msra.mxu0 %v27
  %55 = vmatprep.subr.mxu0 0.0
  %56 = vmatpush1.msra.mxu0 %v28
  %57 = vmatprep.subr.mxu0 0.0
  %58 = vmatpush1.msra.mxu0 %v29
  %59 = vmatprep.subr.mxu0 0.0
  %60 = vmatpush1.msra.mxu0 %v30
  %61 = vmatprep.subr.mxu0 0.0
  %62 = vmatpush1.msra.mxu0 %v31
  %63 = vmatprep.subr.mxu0 0.0
  %64 = vmatpush1.msra.mxu0 %v32
  %65 = vmatprep.subr.mxu0 0.0
  %66 = vmatpush1.msra.mxu0 %v33
  %67 = vmatprep.subr.mxu0 0.0
  %68 = vmatpush1.msra.mxu0 %v34
  %69 = vmatprep.subr.mxu0 0.0
  %70 = vmatpush1.msra.mxu0 %v35
  %71 = vmatprep.subr.mxu0 0.0
  %72 = vmatpush1.msra.mxu0 %v36
  %73 = vmatprep.subr.mxu0 0.0
  %74 = vmatpush1.msra.mxu0 %v37
  %75 = vmatprep.subr.mxu0 0.0
  %76 = vmatpush1.msra.mxu0 %v38
  %77 = vmatprep.subr.mxu0 0.0
  %78 = vmatpush1.msra.mxu0 %v39
  %79 = vmatprep.subr.mxu0 0.0
  %80 = vmatpush1.msra.mxu0 0.0
  %81 = vmatprep.subr.mxu0 0.0
  %82 = vmatpush1.msra.mxu0 0.0
  %83 = vmatprep.subr.mxu0 0.0
  %84 = vmatpush1.msra.mxu0 0.0
  %85 = vmatprep.subr.mxu0 0.0
  %86 = vmatpush1.msra.mxu0 0.0
  %87 = vmatprep.subr.mxu0 0.0
  %88 = vmatpush1.msra.mxu0 0.0
  %89 = vmatprep.subr.mxu0 0.0
  %90 = vmatpush1.msra.mxu0 0.0
  %91 = vmatprep.subr.mxu0 0.0
  %92 = vmatpush1.msra.mxu0 0.0
  %93 = vmatprep.subr.mxu0 0.0
  %94 = vmatpush1.msra.mxu0 0.0
  %95 = vmatprep.subr.mxu0 0.0
  %96 = vmatpush1.msra.mxu0 0.0
  %97 = vmatprep.subr.mxu0 0.0
  %98 = vmatpush1.msra.mxu0 0.0
  %99 = vmatprep.subr.mxu0 0.0
  %100 = vmatpush1.msra.mxu0 0.0
  %101 = vmatprep.subr.mxu0 0.0
  %102 = vmatpush1.msra.mxu0 0.0
  %103 = vmatprep.subr.mxu0 0.0
  %104 = vmatpush1.msra.mxu0 0.0
  %105 = vmatprep.subr.mxu0 0.0
  %106 = vmatpush1.msra.mxu0 0.0
  %107 = vmatprep.subr.mxu0 0.0
  %108 = vmatpush1.msra.mxu0 0.0
  %109 = vmatprep.subr.mxu0 0.0
  %110 = vmatpush1.msra.mxu0 0.0
  %111 = vmatprep.mubr.f32.mxu0 0.0
  %112 = vmatmul.mubr.f32.gmra.mrb[0].mxu0 %v20
  %v113 = vpop.f32.mrb[0].mxu0
  %v114 = vadd.f32 %v45, %v113
  %v115 = vpop.f32.mrb[0].mxu0
  %116 = vmatprep.mubr.f32.mxu0 0.0
  %117 = vmatmul.mubr.f32.gmra.mrb[0].mxu0 %v21
  %v118 = vpop.f32.mrb[0].mxu0
  %v119 = vadd.f32 %v45, %v118
  %v120 = vpop.f32.mrb[0].mxu0
  %121 = vmatprep.mubr.f32.mxu0 0.0
  %122 = vmatmul.mubr.f32.gmra.mrb[0].mxu0 %v22
  %v123 = vpop.f32.mrb[0].mxu0
  %v124 = vadd.f32 %v45, %v123
  %v125 = vpop.f32.mrb[0].mxu0
  %126 = vmatprep.mubr.f32.mxu0 0.0
  %127 = vmatmul.mubr.f32.gmra.mrb[0].mxu0 %v23
  %v128 = vpop.f32.mrb[0].mxu0
  %v129 = vadd.f32 %v45, %v128
  %v130 = vpop.f32.mrb[0].mxu0
  %131 = vdwg.mxu0
  %v132 = vmax.f32 %v114, 0.0
  %v133 = vmax.f32 %v119, 0.0
  %v134 = vmax.f32 %v124, 0.0
  %v135 = vmax.f32 %v129, 0.0
  %v136 = vld [vmem:[%s3] sm:$0xff]
  %v137 = vld [vmem:[%s3 + $0x8] sm:$0xff]
  %v138 = vld [vmem:[%s3 + $0x10] sm:$0xff]
  %v139 = vld [vmem:[%s3 + $0x18] sm:$0xff]
  %v140 = vld [vmem:[%s3 + $0x20] sm:$0xff]
  %v141 = vld [vmem:[%s3 + $0x28] sm:$0xff]
  %v142 = vld [vmem:[%s3 + $0x30] sm:$0xff]
  %v143 = vld [vmem:[%s3 + $0x38] sm:$0xff]
  %v144 = vld [vmem:[%s4] sm:$0x1]
  %v146 = vlaneseq
  %v147 = vshrl.u32 %v146, 7
  %v148 = vsub.s32 0, %v147
  %v149 = vrot.slane %v144, %v148
  %vm151 = vcmask 523264
  %v153 = vsel %vm151, %v132, 0
  %v156 = vsel %vm151, %v133, 0
  %v159 = vsel %vm151, %v134, 0
  %v162 = vsel %vm151, %v135, 0
  %164 = vmatprep.subr.mxu0 0.0
  %165 = vmatpush1.msra.mxu0 %v136
  %166 = vmatprep.subr.mxu0 0.0
  %167 = vmatpush1.msra.mxu0 %v137
  %168 = vmatprep.subr.mxu0 0.0
  %169 = vmatpush1.msra.mxu0 %v138
  %170 = vmatprep.subr.mxu0 0.0
  %171 = vmatpush1.msra.mxu0 %v139
  %172 = vmatprep.subr.mxu0 0.0
  %173 = vmatpush1.msra.mxu0 %v140
  %174 = vmatprep.subr.mxu0 0.0
  %175 = vmatpush1.msra.mxu0 %v141
  %176 = vmatprep.subr.mxu0 0.0
  %177 = vmatpush1.msra.mxu0 %v142
  %178 = vmatprep.subr.mxu0 0.0
  %179 = vmatpush1.msra.mxu0 %v143
  %180 = vmatprep.subr.mxu0 0.0
  %181 = vmatpush1.msra.mxu0 0.0
  %182 = vmatprep.subr.mxu0 0.0
  %183 = vmatpush1.msra.mxu0 0.0
  %184 = vmatprep.subr.mxu0 0.0
  %185 = vmatpush1.msra.mxu0 0.0
  %186 = vmatprep.subr.mxu0 0.0
  %187 = vmatpush1.msra.mxu0 0.0
  %188 = vmatprep.subr.mxu0 0.0
  %189 = vmatpush1.msra.mxu0 0.0
  %190 = vmatprep.subr.mxu0 0.0
  %191 = vmatpush1.msra.mxu0 0.0
  %192 = vmatprep.subr.mxu0 0.0
  %193 = vmatpush1.msra.mxu0 0.0
  %194 = vmatprep.subr.mxu0 0.0
  %195 = vmatpush1.msra.mxu0 0.0
  %196 = vmatprep.subr.mxu0 0.0
  %197 = vmatpush1.msra.mxu0 0.0
  %198 = vmatprep.subr.mxu0 0.0
  %199 = vmatpush1.msra.mxu0 0.0
  %200 = vmatprep.subr.mxu0 0.0
  %201 = vmatpush1.msra.mxu0 0.0
  %202 = vmatprep.subr.mxu0 0.0
  %203 = vmatpush1.msra.mxu0 0.0
  %204 = vmatprep.subr.mxu0 0.0
  %205 = vmatpush1.msra.mxu0 0.0
  %206 = vmatprep.subr.mxu0 0.0
  %207 = vmatpush1.msra.mxu0 0.0
  %208 = vmatprep.subr.mxu0 0.0
  %209 = vmatpush1.msra.mxu0 0.0
  %210 = vmatprep.subr.mxu0 0.0
  %211 = vmatpush1.msra.mxu0 0.0
  %212 = vmatprep.subr.mxu0 0.0
  %213 = vmatpush1.msra.mxu0 0.0
  %214 = vmatprep.subr.mxu0 0.0
  %215 = vmatpush1.msra.mxu0 0.0
  %216 = vmatprep.subr.mxu0 0.0
  %217 = vmatpush1.msra.mxu0 0.0
  %218 = vmatprep.subr.mxu0 0.0
  %219 = vmatpush1.msra.mxu0 0.0
  %220 = vmatprep.subr.mxu0 0.0
  %221 = vmatpush1.msra.mxu0 0.0
  %222 = vmatprep.subr.mxu0 0.0
  %223 = vmatpush1.msra.mxu0 0.0
  %224 = vmatprep.subr.mxu0 0.0
  %225 = vmatpush1.msra.mxu0 0.0
  %226 = vmatprep.subr.mxu0 0.0
  %227 = vmatpush1.msra.mxu0 0.0
  %228 = vmatprep.mubr.f32.mxu0 0.0
  %229 = vmatmul.mubr.f32.gmra.mrb[0].mxu0 %v153
  %v230 = vpop.f32.mrb[0].mxu0
  %v231 = vadd.f32 %v149, %v230
  %v232 = vpop.f32.mrb[0].mxu0
  %233 = vmatprep.mubr.f32.mxu0 0.0
  %234 = vmatmul.mubr.f32.gmra.mrb[0].mxu0 %v156
  %v235 = vpop.f32.mrb[0].mxu0
  %v236 = vadd.f32 %v149, %v235
  %v237 = vpop.f32.mrb[0].mxu0
  %238 = vmatprep.mubr.f32.mxu0 0.0
  %239 = vmatmul.mubr.f32.gmra.mrb[0].mxu0 %v159
  %v240 = vpop.f32.mrb[0].mxu0
  %v241 = vadd.f32 %v149, %v240
  %v242 = vpop.f32.mrb[0].mxu0
  %243 = vmatprep.mubr.f32.mxu0 0.0
  %244 = vmatmul.mubr.f32.gmra.mrb[0].mxu0 %v162
  %v245 = vpop.f32.mrb[0].mxu0
  %v246 = vadd.f32 %v149, %v245
  %v247 = vpop.f32.mrb[0].mxu0
  %248 = vdwg.mxu0
  %vm249 = vcmask 64512
  %250 = vst.msk [vmem:[%s5] sm:$0xff] %vm249, %v231
  %251 = vst.msk [vmem:[%s5 + $0x8] sm:$0xff] %vm249, %v236
  %252 = vst.msk [vmem:[%s5 + $0x10] sm:$0xff] %vm249, %v241
  %253 = vst.msk [vmem:[%s5 + $0x18] sm:$0xff] %vm249, %v246
  // Predicated region
  $region22: #{tpu_custom_call.1} parent=0 // pred_check
    _
  $region23: #{tpu_custom_call.1} parent=0 // pred_check_branch
    %255 = sbr.rel (0) target = $region25
  $region24: #{tpu_custom_call.1} parent=0 // pred_region
    _
  $region25: #{tpu_custom_call.1} parent=0 // pred_fallthru
    _
  // Predicated region
  $region26: #{tpu_custom_call.1} parent=0 // pred_check
    _
  $region27: #{tpu_custom_call.1} parent=0 // pred_check_branch
    %257 = sbr.rel (0) target = $region29
  $region28: #{tpu_custom_call.1} parent=0 // pred_region
    _
  $region29: #{tpu_custom_call.1} parent=0 // pred_fallthru
    _

</llo_original>
